<compile_context>
chip_gen: v6e
topology: v6e:2x2x1
jax: 0.10.0
libtpu: 0.0.40
codegen_flags: <defaults>
</compile_context>

<pallas_src>
import functools

import jax
import jax.numpy as jnp
import numpy as np
from jax.experimental import pallas as pl
from jax.experimental.pallas import tpu as pltpu


def _cross_attn_kernel(x_ref, k_ref, v_ref, wq_ref, wo_ref, bo_ref, out_ref,
                       acc_ref, *, heads, dim_head, mxu_dtype, approx_recip):
    def mm(a, b):
        # MXU matmul with f32 accumulation; optionally feed narrower operands.
        # Grid-invariant operands are already pre-cast in the wrapper, so the
        # astype below is a no-op for them.
        if mxu_dtype is not None:
            a = a.astype(mxu_dtype)
            b = b.astype(mxu_dtype)
        return jnp.dot(a, b, preferred_element_type=jnp.float32)

    d = dim_head
    x_cm = x_ref[0]                         # (Cq, bn) channel-major query tile (NCW)
    k_all = k_ref[0]                        # (H, M, d) token-major keys (per batch)
    v_all = v_ref[0]                        # (H, d, M) channel-major values (per batch)

    # Head-fused, channel-major Q projection: one wide NN matmul whose MXU
    # output width is block_n (>=128). Softmax scale is pre-folded into Wq.
    q_all = mm(wq_ref[...], x_cm)           # (H*d, bn), f32
    if mxu_dtype is not None:
        q_all = q_all.astype(mxu_dtype)     # cast once here, not once per head

    for h in range(heads):                  # static unroll; heads is small
        q_h = q_all[h * d:(h + 1) * d, :]                  # (d, bn)  sublane slice
        # sim^T[j, i] = sum_c k[c, j] * (scale * q[c, i])   -> plain NN matmul
        sim_t = mm(k_all[h], q_h)                          # (M, bn), f32
        # softmax over the context axis (axis 0); elementwise math stays f32.
        sim_t = sim_t - jnp.max(sim_t, axis=0, keepdims=True)
        p = jnp.exp(sim_t)
        denom = jnp.sum(p, axis=0, keepdims=True)          # (1, bn)
        attn_t = p * pl.reciprocal(denom, approx=approx_recip)
        # out_h[c, i] = sum_j v[c, j] * attn[i, j]          -> plain NN matmul
        # Store into VMEM scratch at sublane offset h*d (d is a multiple of 8
        # for f32): bounds live ranges, no concat, one wide Wo matmul after.
        acc_ref[h * d:(h + 1) * d, :] = mm(v_all[h], attn_t)   # (d, bn)

    y = mm(wo_ref[...], acc_ref[...]) + bo_ref[...]        # (Cq, bn) + (Cq, 1)
    out_ref[0] = y.astype(out_ref.dtype)                   # NCW write, tokens on lanes


def cross_attention_forward(x, context, params, *, heads, dim_head,
                            block_n=None, mxu_dtype=None, approx_recip=True,
                            single_buffer_weights=False, vmem_limit_bytes=None):
    """x: (B, query_dim, N) NCW;  context: (B, context_dim, M) NCW (or None)."""
    if context is None:
        context = x
    B, Cq, N = x.shape
    _, Cc, M = context.shape
    H, D = heads, dim_head
    inner = H * D
    scale = float(D) ** -0.5
    f32 = jnp.float32

    # ---- One-time wrapper prep (tiny XLA work, hoisted out of the N-tile grid) ----
    wq_s = params["wq"].astype(f32) * scale                       # (inner, Cq), scale folded
    wo = params["wo"].astype(f32)                                 # (Cq, inner)
    bo = params["bo"].reshape(Cq, 1).astype(f32)                  # (Cq, 1)

    # Hoisted K/V projections: computed once per batch (not once per N tile).
    #   K token-major per head   (B, H, M, D) -> sim^T = K_h @ Q_h  is a plain NN matmul
    #   V channel-major per head (B, H, D, M) -> out_h = V_h @ attn^T is a plain NN matmul
    k_cm = jnp.einsum('oc,bcm->bom', params["wk"].astype(f32), context.astype(f32))
    v_cm = jnp.einsum('oc,bcm->bom', params["wv"].astype(f32), context.astype(f32))
    k4 = jnp.transpose(k_cm.reshape(B, H, D, M), (0, 1, 3, 2))    # (B, H, M, D)
    v4 = v_cm.reshape(B, H, D, M)                                 # (B, H, D, M)

    # Pre-cast grid-invariant operands to the MXU dtype once (saves per-step
    # VPU casts and halves their DMA/VMEM bytes with bf16).
    x_in = x
    if mxu_dtype is not None:
        wq_s = wq_s.astype(mxu_dtype)
        wo = wo.astype(mxu_dtype)
        k4 = k4.astype(mxu_dtype)
        v4 = v4.astype(mxu_dtype)
        x_in = x.astype(mxu_dtype)

    if block_n is None:
        block_n = N                  # small/medium N: all tokens in one grid step
    assert N % block_n == 0, \
        "block_n must divide N (use a multiple of 128, ideally 256-512, for large N)"
    n_blocks = N // block_n

    def _const_spec(shape):
        idx = lambda b, n: (0,) * len(shape)
        if single_buffer_weights:
            # VMEM trim (e.g. v7x 64 MiB): no double-buffering for constants.
            return pl.BlockSpec(shape, idx, pipeline_mode=pl.Buffered(1))
        return pl.BlockSpec(shape, idx)

    kernel = functools.partial(_cross_attn_kernel, heads=H, dim_head=D,
                               mxu_dtype=mxu_dtype, approx_recip=approx_recip)

    return pl.pallas_call(
        kernel,
        out_shape=jax.ShapeDtypeStruct((B, Cq, N), x.dtype),
        grid=(B, n_blocks),
        in_specs=[
            pl.BlockSpec((1, Cq, block_n), lambda b, n: (b, 0, n)),   # x, NCW
            pl.BlockSpec((1, H, M, D), lambda b, n: (b, 0, 0, 0)),    # K token-major
            pl.BlockSpec((1, H, D, M), lambda b, n: (b, 0, 0, 0)),    # V channel-major
            _const_spec((inner, Cq)),                                 # Wq (scaled, fused)
            _const_spec((Cq, inner)),                                 # Wo (head-fused)
            _const_spec((Cq, 1)),                                     # output bias
        ],
        out_specs=pl.BlockSpec((1, Cq, block_n), lambda b, n: (b, 0, n)),
        scratch_shapes=[pltpu.VMEM((inner, block_n), jnp.float32)],   # per-head outs
        compiler_params=pltpu.CompilerParams(
            dimension_semantics=("parallel", "parallel"),
            vmem_limit_bytes=vmem_limit_bytes),
    )(x_in, k4, v4, wq_s, wo, bo)


def reference_forward(x, context, params, *, heads, dim_head):
    """Pure-JAX reference mirroring the PyTorch forward (eval mode, no mask)."""
    if context is None:
        context = x
    B = x.shape[0]
    scale = float(dim_head) ** -0.5
    q = jnp.einsum('oc,bcn->bon', params["wq"], x)
    k = jnp.einsum('oc,bcm->bom', params["wk"], context)
    v = jnp.einsum('oc,bcm->bom', params["wv"], context)
    split = lambda t: t.reshape(B, heads, dim_head, t.shape[-1])
    qh, kh, vh = split(q), split(k), split(v)
    sim = jnp.einsum('bhdi,bhdj->bhij', qh, kh) * scale
    attn = jax.nn.softmax(sim, axis=-1)
    out = jnp.einsum('bhij,bhdj->bhid', attn, vh)                 # (B, h, N, d)
    out = jnp.transpose(out, (0, 1, 3, 2)).reshape(B, heads * dim_head, -1)
    return jnp.einsum('oc,bcn->bon', params["wo"], out) + params["bo"][None, :, None]


if __name__ == "__main__":
    # Small shapes consistent with the module.
    B = 2
    query_dim = 8
    context_dim = 12
    heads = 2
    dim_head = 16
    inner_dim = heads * dim_head

    key = jax.random.PRNGKey(0)
    kx, kc, k1, k2, k3, k4, k5 = jax.random.split(key, 7)

    # Deterministic synthetic parameters (Conv1d kernel-size-1 weights, squeezed).
    params = {
        "wq": jax.random.normal(k1, (inner_dim, query_dim), jnp.float32) * 0.1,
        "wk": jax.random.normal(k2, (inner_dim, context_dim), jnp.float32) * 0.1,
        "wv": jax.random.normal(k3, (inner_dim, context_dim), jnp.float32) * 0.1,
        "wo": jax.random.normal(k4, (query_dim, inner_dim), jnp.float32) * 0.1,
        "bo": jax.random.normal(k5, (query_dim,), jnp.float32) * 0.1,
    }

    # --- run 1: tiny shapes, single N block, exact reciprocal (tight check) ---
    N, M = 16, 8
    x = jax.random.normal(kx, (B, query_dim, N), jnp.float32)          # NCW
    context = jax.random.normal(kc, (B, context_dim, M), jnp.float32)  # NCW
    out = cross_attention_forward(x, context, params, heads=heads,
                                  dim_head=dim_head, approx_recip=False)
    out = jax.block_until_ready(out)
    ref = reference_forward(x, context, params, heads=heads, dim_head=dim_head)
    np.testing.assert_allclose(np.asarray(out), np.asarray(ref), rtol=1e-5, atol=1e-5)
    assert out.shape == (B, query_dim, N)

    # --- run 2: N tiled over the grid (block_n=128), EUP approx reciprocal ---
    N2, M2 = 256, 8
    kx2, kc2 = jax.random.split(jax.random.PRNGKey(1))
    x2 = jax.random.normal(kx2, (B, query_dim, N2), jnp.float32)
    ctx2 = jax.random.normal(kc2, (B, context_dim, M2), jnp.float32)
    out2 = jax.block_until_ready(
        cross_attention_forward(x2, ctx2, params, heads=heads, dim_head=dim_head,
                                block_n=128))
    ref2 = reference_forward(x2, ctx2, params, heads=heads, dim_head=dim_head)
    np.testing.assert_allclose(np.asarray(out2), np.asarray(ref2), rtol=5e-3, atol=5e-3)

    # --- run 3: bf16 MXU operands (pre-cast invariants), loose tolerance ---
    out3 = jax.block_until_ready(
        cross_attention_forward(x2, ctx2, params, heads=heads, dim_head=dim_head,
                                block_n=128, mxu_dtype=jnp.bfloat16))
    np.testing.assert_allclose(np.asarray(out3), np.asarray(ref2), rtol=5e-2, atol=5e-2)

    print("KERNEL_OK")
</pallas_src>

<mosaic_0001>
module attributes {stable_mosaic.version = 11 : i64} {
  func.func @_cross_attn_kernel(%arg0: i32, %arg1: i32, %arg2: memref<1x8x16xf32, #tpu.memory_space<vmem>>, %arg3: memref<1x2x8x16xf32, #tpu.memory_space<vmem>>, %arg4: memref<1x2x16x8xf32, #tpu.memory_space<vmem>>, %arg5: memref<32x8xf32, #tpu.memory_space<vmem>>, %arg6: memref<8x32xf32, #tpu.memory_space<vmem>>, %arg7: memref<8x1xf32, #tpu.memory_space<vmem>>, %arg8: memref<1x8x16xf32, #tpu.memory_space<vmem>>, %arg9: memref<32x16xf32, #tpu.memory_space<vmem>>) attributes {dimension_semantics = [#tpu.dimension_semantics<parallel>, #tpu.dimension_semantics<parallel>], iteration_bounds = array<i64: 2, 1>, scalar_prefetch = 0 : i64, scratch_operands = 1 : i64, tpu.core_type = #tpu.core_type<tc>, window_params = [{transform_indices = @transform_0, window_bounds = array<i64: 1, 8, 16>}, {transform_indices = @transform_1, window_bounds = array<i64: 1, 2, 8, 16>}, {transform_indices = @transform_2, window_bounds = array<i64: 1, 2, 16, 8>}, {pipeline_mode = #tpu.pipeline_mode<synchronous>, transform_indices = @transform_3, window_bounds = array<i64: 32, 8>}, {pipeline_mode = #tpu.pipeline_mode<synchronous>, transform_indices = @transform_4, window_bounds = array<i64: 8, 32>}, {pipeline_mode = #tpu.pipeline_mode<synchronous>, transform_indices = @transform_5, window_bounds = array<i64: 8, 1>}, {transform_indices = @transform_6, window_bounds = array<i64: 1, 8, 16>}]} {
    %c0 = arith.constant 0 : index
    %c0_0 = arith.constant 0 : index
    %c0_1 = arith.constant 0 : index
    %0 = vector.load %arg2[%c0, %c0_0, %c0_1] : memref<1x8x16xf32, #tpu.memory_space<vmem>>, vector<1x8x16xf32>
    %1 = vector.shape_cast %0 : vector<1x8x16xf32> to vector<8x16xf32>
    %c0_2 = arith.constant 0 : index
    %c0_3 = arith.constant 0 : index
    %c0_4 = arith.constant 0 : index
    %c0_5 = arith.constant 0 : index
    %2 = vector.load %arg3[%c0_2, %c0_3, %c0_4, %c0_5] : memref<1x2x8x16xf32, #tpu.memory_space<vmem>>, vector<1x2x8x16xf32>
    %3 = vector.shape_cast %2 : vector<1x2x8x16xf32> to vector<2x8x16xf32>
    %c0_6 = arith.constant 0 : index
    %c0_7 = arith.constant 0 : index
    %c0_8 = arith.constant 0 : index
    %c0_9 = arith.constant 0 : index
    %4 = vector.load %arg4[%c0_6, %c0_7, %c0_8, %c0_9] : memref<1x2x16x8xf32, #tpu.memory_space<vmem>>, vector<1x2x16x8xf32>
    %5 = vector.shape_cast %4 : vector<1x2x16x8xf32> to vector<2x16x8xf32>
    %c0_10 = arith.constant 0 : index
    %c0_11 = arith.constant 0 : index
    %6 = vector.load %arg5[%c0_10, %c0_11] : memref<32x8xf32, #tpu.memory_space<vmem>>, vector<32x8xf32>
    %cst = arith.constant dense<0.000000e+00> : vector<32x16xf32>
    %7 = tpu.matmul %6, %1, %cst {dimension_numbers = #tpu.dot_dimension_numbers<[1], [0], [0], [1], [0, 0, 1, 1], [], []>} : vector<32x8xf32>, vector<8x16xf32>, vector<32x16xf32> -> vector<32x16xf32>
    %8 = vector.extract_strided_slice %7 {offsets = [0, 0], sizes = [16, 16], strides = [1, 1]} : vector<32x16xf32> to vector<16x16xf32>
    %9 = vector.extract_strided_slice %3 {offsets = [0, 0, 0], sizes = [1, 8, 16], strides = [1, 1, 1]} : vector<2x8x16xf32> to vector<1x8x16xf32>
    %10 = vector.shape_cast %9 : vector<1x8x16xf32> to vector<8x16xf32>
    %cst_12 = arith.constant dense<0.000000e+00> : vector<8x16xf32>
    %11 = tpu.matmul %10, %8, %cst_12 {dimension_numbers = #tpu.dot_dimension_numbers<[1], [0], [0], [1], [0, 0, 1, 1], [], []>} : vector<8x16xf32>, vector<16x16xf32>, vector<8x16xf32> -> vector<8x16xf32>
    %cst_13 = arith.constant dense<0xFF800000> : vector<16xf32>
    %12 = vector.multi_reduction <maximumf>, %11, %cst_13 [0] : vector<8x16xf32> to vector<16xf32>
    %13 = vector.shape_cast %12 : vector<16xf32> to vector<1x16xf32>
    %14 = vector.broadcast %13 : vector<1x16xf32> to vector<8x16xf32>
    %15 = arith.subf %11, %14 : vector<8x16xf32>
    %16 = math.exp %15 : vector<8x16xf32>
    %cst_14 = arith.constant dense<0.000000e+00> : vector<16xf32>
    %17 = vector.multi_reduction <add>, %16, %cst_14 [0] : vector<8x16xf32> to vector<16xf32>
    %18 = vector.shape_cast %17 : vector<16xf32> to vector<1x16xf32>
    %19 = tpu.reciprocal %18 : vector<1x16xf32> -> vector<1x16xf32>
    %20 = vector.broadcast %19 : vector<1x16xf32> to vector<8x16xf32>
    %21 = arith.mulf %16, %20 : vector<8x16xf32>
    %22 = vector.extract_strided_slice %5 {offsets = [0, 0, 0], sizes = [1, 16, 8], strides = [1, 1, 1]} : vector<2x16x8xf32> to vector<1x16x8xf32>
    %23 = vector.shape_cast %22 : vector<1x16x8xf32> to vector<16x8xf32>
    %cst_15 = arith.constant dense<0.000000e+00> : vector<16x16xf32>
    %24 = tpu.matmul %23, %21, %cst_15 {dimension_numbers = #tpu.dot_dimension_numbers<[1], [0], [0], [1], [0, 0, 1, 1], [], []>} : vector<16x8xf32>, vector<8x16xf32>, vector<16x16xf32> -> vector<16x16xf32>
    %c0_16 = arith.constant 0 : index
    %c0_17 = arith.constant 0 : index
    %25 = vector.load %arg9[%c0_16, %c0_17] : memref<32x16xf32, #tpu.memory_space<vmem>>, vector<16x16xf32>
    tpu.vector_store %arg9[%c0_16, %c0_17], %24 {strides = array<i32>} : memref<32x16xf32, #tpu.memory_space<vmem>>, vector<16x16xf32>,
    %26 = vector.extract_strided_slice %7 {offsets = [16, 0], sizes = [16, 16], strides = [1, 1]} : vector<32x16xf32> to vector<16x16xf32>
    %27 = vector.extract_strided_slice %3 {offsets = [1, 0, 0], sizes = [1, 8, 16], strides = [1, 1, 1]} : vector<2x8x16xf32> to vector<1x8x16xf32>
    %28 = vector.shape_cast %27 : vector<1x8x16xf32> to vector<8x16xf32>
    %cst_18 = arith.constant dense<0.000000e+00> : vector<8x16xf32>
    %29 = tpu.matmul %28, %26, %cst_18 {dimension_numbers = #tpu.dot_dimension_numbers<[1], [0], [0], [1], [0, 0, 1, 1], [], []>} : vector<8x16xf32>, vector<16x16xf32>, vector<8x16xf32> -> vector<8x16xf32>
    %cst_19 = arith.constant dense<0xFF800000> : vector<16xf32>
    %30 = vector.multi_reduction <maximumf>, %29, %cst_19 [0] : vector<8x16xf32> to vector<16xf32>
    %31 = vector.shape_cast %30 : vector<16xf32> to vector<1x16xf32>
    %32 = vector.broadcast %31 : vector<1x16xf32> to vector<8x16xf32>
    %33 = arith.subf %29, %32 : vector<8x16xf32>
    %34 = math.exp %33 : vector<8x16xf32>
    %cst_20 = arith.constant dense<0.000000e+00> : vector<16xf32>
    %35 = vector.multi_reduction <add>, %34, %cst_20 [0] : vector<8x16xf32> to vector<16xf32>
    %36 = vector.shape_cast %35 : vector<16xf32> to vector<1x16xf32>
    %37 = tpu.reciprocal %36 : vector<1x16xf32> -> vector<1x16xf32>
    %38 = vector.broadcast %37 : vector<1x16xf32> to vector<8x16xf32>
    %39 = arith.mulf %34, %38 : vector<8x16xf32>
    %40 = vector.extract_strided_slice %5 {offsets = [1, 0, 0], sizes = [1, 16, 8], strides = [1, 1, 1]} : vector<2x16x8xf32> to vector<1x16x8xf32>
    %41 = vector.shape_cast %40 : vector<1x16x8xf32> to vector<16x8xf32>
    %cst_21 = arith.constant dense<0.000000e+00> : vector<16x16xf32>
    %42 = tpu.matmul %41, %39, %cst_21 {dimension_numbers = #tpu.dot_dimension_numbers<[1], [0], [0], [1], [0, 0, 1, 1], [], []>} : vector<16x8xf32>, vector<8x16xf32>, vector<16x16xf32> -> vector<16x16xf32>
    %c16 = arith.constant 16 : index
    %c0_22 = arith.constant 0 : index
    %43 = vector.load %arg9[%c16, %c0_22] : memref<32x16xf32, #tpu.memory_space<vmem>>, vector<16x16xf32>
    tpu.vector_store %arg9[%c16, %c0_22], %42 {strides = array<i32>} : memref<32x16xf32, #tpu.memory_space<vmem>>, vector<16x16xf32>,
    %c0_23 = arith.constant 0 : index
    %c0_24 = arith.constant 0 : index
    %44 = vector.load %arg6[%c0_23, %c0_24] : memref<8x32xf32, #tpu.memory_space<vmem>>, vector<8x32xf32>
    %c0_25 = arith.constant 0 : index
    %c0_26 = arith.constant 0 : index
    %45 = vector.load %arg9[%c0_25, %c0_26] : memref<32x16xf32, #tpu.memory_space<vmem>>, vector<32x16xf32>
    %cst_27 = arith.constant dense<0.000000e+00> : vector<8x16xf32>
    %46 = tpu.matmul %44, %45, %cst_27 {dimension_numbers = #tpu.dot_dimension_numbers<[1], [0], [0], [1], [0, 0, 1, 1], [], []>} : vector<8x32xf32>, vector<32x16xf32>, vector<8x16xf32> -> vector<8x16xf32>
    %c0_28 = arith.constant 0 : index
    %c0_29 = arith.constant 0 : index
    %47 = vector.load %arg7[%c0_28, %c0_29] : memref<8x1xf32, #tpu.memory_space<vmem>>, vector<8x1xf32>
    %48 = vector.broadcast %47 : vector<8x1xf32> to vector<8x16xf32>
    %49 = arith.addf %46, %48 : vector<8x16xf32>
    %c0_30 = arith.constant 0 : index
    %c0_31 = arith.constant 0 : index
    %c0_32 = arith.constant 0 : index
    %50 = vector.load %arg8[%c0_30, %c0_31, %c0_32] : memref<1x8x16xf32, #tpu.memory_space<vmem>>, vector<1x8x16xf32>
    %51 = vector.shape_cast %50 : vector<1x8x16xf32> to vector<8x16xf32>
    %52 = vector.shape_cast %49 : vector<8x16xf32> to vector<1x8x16xf32>
    tpu.vector_store %arg8[%c0_30, %c0_31, %c0_32], %52 {strides = array<i32>} : memref<1x8x16xf32, #tpu.memory_space<vmem>>, vector<1x8x16xf32>,
    return
  }
  func.func @transform_0(%arg0: i32, %arg1: i32) -> (i32, i32, i32) {
    %c0_i32 = arith.constant 0 : i32
    %c0_i32_0 = arith.constant 0 : i32
    return %arg0, %c0_i32, %arg1 : i32, i32, i32
  }
  func.func @transform_1(%arg0: i32, %arg1: i32) -> (i32, i32, i32, i32) {
    %c0_i32 = arith.constant 0 : i32
    %c0_i32_0 = arith.constant 0 : i32
    %c0_i32_1 = arith.constant 0 : i32
    %c0_i32_2 = arith.constant 0 : i32
    return %arg0, %c0_i32, %c0_i32_0, %c0_i32_1 : i32, i32, i32, i32
  }
  func.func @transform_2(%arg0: i32, %arg1: i32) -> (i32, i32, i32, i32) {
    %c0_i32 = arith.constant 0 : i32
    %c0_i32_0 = arith.constant 0 : i32
    %c0_i32_1 = arith.constant 0 : i32
    %c0_i32_2 = arith.constant 0 : i32
    return %arg0, %c0_i32, %c0_i32_0, %c0_i32_1 : i32, i32, i32, i32
  }
  func.func @transform_3(%arg0: i32, %arg1: i32) -> (i32, i32) {
    %c0_i32 = arith.constant 0 : i32
    %c0_i32_0 = arith.constant 0 : i32
    %c0_i32_1 = arith.constant 0 : i32
    return %c0_i32, %c0_i32_0 : i32, i32
  }
  func.func @transform_4(%arg0: i32, %arg1: i32) -> (i32, i32) {
    %c0_i32 = arith.constant 0 : i32
    %c0_i32_0 = arith.constant 0 : i32
    %c0_i32_1 = arith.constant 0 : i32
    return %c0_i32, %c0_i32_0 : i32, i32
  }
  func.func @transform_5(%arg0: i32, %arg1: i32) -> (i32, i32) {
    %c0_i32 = arith.constant 0 : i32
    %c0_i32_0 = arith.constant 0 : i32
    %c0_i32_1 = arith.constant 0 : i32
    return %c0_i32, %c0_i32_0 : i32, i32
  }
  func.func @transform_6(%arg0: i32, %arg1: i32) -> (i32, i32, i32) {
    %c0_i32 = arith.constant 0 : i32
    %c0_i32_0 = arith.constant 0 : i32
    return %arg0, %c0_i32, %arg1 : i32, i32, i32
  }
}

</mosaic_0001>

<llo_original>
// kernel: tpu_custom_call.1
$region0: #{tpu_custom_call.1}
  #allocation0 [shape = 'u32[]', space=smem, size = 0x4, offset = 0x4, fixed_abs, tag = 'smem constant byte address 0x4 - core index']
  #allocation1 [shape = 'u32[144,128]{1,0:T(1,128)}', space=vmem, size = 0x12000, scoped, tag = 'internal scratch']
  #allocation2 [shape = 'f32[32,16]{1,0:T(8,128)}', space=vmem, size = 0x4000, scoped, tag = 'scratch operand']
  %s0 = inlined_call_operand.vmem [shape: f32[2,8,16], index: 0, kind: input, shape index: {}]
  %s1 = inlined_call_operand.vmem [shape: f32[2,2,8,16], index: 1, kind: input, shape index: {}]
  %s2 = inlined_call_operand.vmem [shape: f32[2,2,16,8], index: 2, kind: input, shape index: {}]
  %s3 = inlined_call_operand.vmem [shape: f32[32,8], index: 3, kind: input, shape index: {}]
  %s4 = inlined_call_operand.vmem [shape: f32[8,32], index: 4, kind: input, shape index: {}]
  %s5 = inlined_call_operand.vmem [shape: f32[8,1], index: 5, kind: input, shape index: {}]
  %s6 = inlined_call_operand.hbm [shape: f32[2,8,16], index: 6, kind: output, shape index: {}]
  %s7 = sld [smem:[#allocation0]]
  $region57: #{tpu_custom_call.1} parent=0
    _
  %s9 = ssub.s32 1, %s7
  %s10 = scalar_select 0, %s9, %s7
  $region1: #{tpu_custom_call.1} parent=0
    #allocation3 [shape = 'u8[8192]{0}', space=vmem, size = 0x2000, scoped, tag = 'output window, operand 0']
    #allocation4 [shape = 's32[2]{0}', space=sflag, size = 0x8, scoped, tag = 'scoped memory for tpu_custom_call.1']
    %11 = vsyncpa [#allocation4], 0
    %s12 = scalar_lea.sflag [#allocation4], 1
    %13 = vsyncpa %s12, 0
    loop: start=0, step=1, limit=4
    $region2: #{tpu_custom_call.1} parent=1 // loop_pre_header
      _
    $region3: #{tpu_custom_call.1} parent=1 // loop_header
      %s15 = sphi 0, %s19
      %p16 = scmp.ge.s32.totalorder %s15, 4
      %s22 = sphi 0, %s34
      %s23 = sphi 0, %s30
      %s24 = sphi 0, %s22
      %s25 = sphi 0, %s23
      %s26 = sphi 0, %s24
      %s27 = sphi 0, %s25
      %s39 = sphi 0, %s41
      %s42 = sphi 0, %s39
      %s43 = sphi 0, %s42
      %s59 = sphi 0, %s43
      %s65 = sphi 0, %s67
      %s68 = sphi 0, %s65
      %s69 = sphi 0, %s68
      %s85 = sphi 0, %s69
      %s91 = sphi 0, %s93
      %s94 = sphi 0, %s91
      %s95 = sphi 0, %s94
      %s111 = sphi 0, %s95
      %s115 = sphi 0, %s115
      %s117 = sphi 0, %s115
      %s118 = sphi 0, %s117
      %s132 = sphi 0, %s118
      %s136 = sphi 0, %s136
      %s138 = sphi 0, %s136
      %s139 = sphi 0, %s138
      %s153 = sphi 0, %s139
      %s157 = sphi 0, %s157
      %s159 = sphi 0, %s157
      %s160 = sphi 0, %s159
      %s174 = sphi 0, %s160
      %s182 = sphi 0, %s184
      %s185 = sphi 0, %s182
      %s186 = sphi 0, %s185
      %s202 = sphi 0, %s186
    $region4: #{tpu_custom_call.1} parent=1 // loop_header_branch
      %18 = sbr.rel (%p16) target = $region8
    $region5: #{tpu_custom_call.1} parent=1 // loop_body
      %s20 = ssub.s32 %s15, 1
      %s21 = ssub.s32 %s15, 2
      %s28 = sadd.s32 1, %s23
      %p29 = scmp.ge.s32.totalorder %s28, 1
      %s30 = scalar_select %p29, 0, %s28
      %s31 = sadd.s32 1, %s22
      %s32 = scalar_select %p29, %s31, %s22
      %p33 = scmp.ge.s32.totalorder %s32, 2
      %s34 = scalar_select %p33, 0, %s32
      %s35 = ssub.s32 %s22, %s34
      %s36 = ssub.s32 %s23, %s30
      %s37 = sor.u32 %s35, %s36
      %p38 = scmp.eq.s32.totalorder %s37, 0
      %s40 = sadd.s32 %s39, 1
      %s41 = scalar_select %p38, %s39, %s40
      %p44 = pneg %p38
      %p45 = scmp.eq.s32.totalorder %s15, 1
      %p46 = por %p44, %p45
      %p47 = scmp.ne.s32.totalorder %s39, %s42
      %p48 = scmp.eq.s32.totalorder %s15, 0
      %p49 = por %p47, %p48
      %p50 = scmp.ne.s32.totalorder %s39, %s42
      %p51 = scmp.eq.s32.totalorder %s20, 1
      %p52 = por %p50, %p51
      %p53 = scmp.ne.s32.totalorder %s42, %s43
      %p54 = scmp.eq.s32.totalorder %s20, 0
      %p55 = por %p53, %p54
      %p56 = scmp.ne.s32.totalorder %s42, %s43
      %p57 = scmp.eq.s32.totalorder %s21, 1
      %p58 = por %p56, %p57
      %p60 = scmp.ne.s32.totalorder %s43, %s59
      %p61 = scmp.eq.s32.totalorder %s21, 0
      %p62 = por %p60, %p61
      %s63 = ssub.s32 %s22, %s34
      %p64 = scmp.eq.s32.totalorder %s63, 0
      %s66 = sadd.s32 %s65, 1
      %s67 = scalar_select %p64, %s65, %s66
      %p70 = pneg %p64
      %p71 = scmp.eq.s32.totalorder %s15, 1
      %p72 = por %p70, %p71
      %p73 = scmp.ne.s32.totalorder %s65, %s68
      %p74 = scmp.eq.s32.totalorder %s15, 0
      %p75 = por %p73, %p74
      %p76 = scmp.ne.s32.totalorder %s65, %s68
      %p77 = scmp.eq.s32.totalorder %s20, 1
      %p78 = por %p76, %p77
      %p79 = scmp.ne.s32.totalorder %s68, %s69
      %p80 = scmp.eq.s32.totalorder %s20, 0
      %p81 = por %p79, %p80
      %p82 = scmp.ne.s32.totalorder %s68, %s69
      %p83 = scmp.eq.s32.totalorder %s21, 1
      %p84 = por %p82, %p83
      %p86 = scmp.ne.s32.totalorder %s69, %s85
      %p87 = scmp.eq.s32.totalorder %s21, 0
      %p88 = por %p86, %p87
      %s89 = ssub.s32 %s22, %s34
      %p90 = scmp.eq.s32.totalorder %s89, 0
      %s92 = sadd.s32 %s91, 1
      %s93 = scalar_select %p90, %s91, %s92
      %p96 = pneg %p90
      %p97 = scmp.eq.s32.totalorder %s15, 1
      %p98 = por %p96, %p97
      %p99 = scmp.ne.s32.totalorder %s91, %s94
      %p100 = scmp.eq.s32.totalorder %s15, 0
      %p101 = por %p99, %p100
      %p102 = scmp.ne.s32.totalorder %s91, %s94
      %p103 = scmp.eq.s32.totalorder %s20, 1
      %p104 = por %p102, %p103
      %p105 = scmp.ne.s32.totalorder %s94, %s95
      %p106 = scmp.eq.s32.totalorder %s20, 0
      %p107 = por %p105, %p106
      %p108 = scmp.ne.s32.totalorder %s94, %s95
      %p109 = scmp.eq.s32.totalorder %s21, 1
      %p110 = por %p108, %p109
      %p112 = scmp.ne.s32.totalorder %s95, %s111
      %p113 = scmp.eq.s32.totalorder %s21, 0
      %p114 = por %p112, %p113
      %s116 = sadd.s32 %s115, 1
      %p119 = scmp.eq.s32.totalorder %s15, 1
      %p120 = scmp.ne.s32.totalorder %s115, %s117
      %p121 = scmp.eq.s32.totalorder %s15, 0
      %p122 = por %p120, %p121
      %p123 = scmp.ne.s32.totalorder %s115, %s117
      %p124 = scmp.eq.s32.totalorder %s20, 1
      %p125 = por %p123, %p124
      %p126 = scmp.ne.s32.totalorder %s117, %s118
      %p127 = scmp.eq.s32.totalorder %s20, 0
      %p128 = por %p126, %p127
      %p129 = scmp.ne.s32.totalorder %s117, %s118
      %p130 = scmp.eq.s32.totalorder %s21, 1
      %p131 = por %p129, %p130
      %p133 = scmp.ne.s32.totalorder %s118, %s132
      %p134 = scmp.eq.s32.totalorder %s21, 0
      %p135 = por %p133, %p134
      %s137 = sadd.s32 %s136, 1
      %p140 = scmp.eq.s32.totalorder %s15, 1
      %p141 = scmp.ne.s32.totalorder %s136, %s138
      %p142 = scmp.eq.s32.totalorder %s15, 0
      %p143 = por %p141, %p142
      %p144 = scmp.ne.s32.totalorder %s136, %s138
      %p145 = scmp.eq.s32.totalorder %s20, 1
      %p146 = por %p144, %p145
      %p147 = scmp.ne.s32.totalorder %s138, %s139
      %p148 = scmp.eq.s32.totalorder %s20, 0
      %p149 = por %p147, %p148
      %p150 = scmp.ne.s32.totalorder %s138, %s139
      %p151 = scmp.eq.s32.totalorder %s21, 1
      %p152 = por %p150, %p151
      %p154 = scmp.ne.s32.totalorder %s139, %s153
      %p155 = scmp.eq.s32.totalorder %s21, 0
      %p156 = por %p154, %p155
      %s158 = sadd.s32 %s157, 1
      %p161 = scmp.eq.s32.totalorder %s15, 1
      %p162 = scmp.ne.s32.totalorder %s157, %s159
      %p163 = scmp.eq.s32.totalorder %s15, 0
      %p164 = por %p162, %p163
      %p165 = scmp.ne.s32.totalorder %s157, %s159
      %p166 = scmp.eq.s32.totalorder %s20, 1
      %p167 = por %p165, %p166
      %p168 = scmp.ne.s32.totalorder %s159, %s160
      %p169 = scmp.eq.s32.totalorder %s20, 0
      %p170 = por %p168, %p169
      %p171 = scmp.ne.s32.totalorder %s159, %s160
      %p172 = scmp.eq.s32.totalorder %s21, 1
      %p173 = por %p171, %p172
      %p175 = scmp.ne.s32.totalorder %s160, %s174
      %p176 = scmp.eq.s32.totalorder %s21, 0
      %p177 = por %p175, %p176
      %s178 = ssub.s32 %s22, %s34
      %s179 = ssub.s32 %s23, %s30
      %s180 = sor.u32 %s178, %s179
      %p181 = scmp.eq.s32.totalorder %s180, 0
      %s183 = sadd.s32 %s182, 1
      %s184 = scalar_select %p181, %s182, %s183
      %p187 = pneg %p181
      %p188 = scmp.eq.s32.totalorder %s15, 1
      %p189 = por %p187, %p188
      %p190 = scmp.ne.s32.totalorder %s182, %s185
      %p191 = scmp.eq.s32.totalorder %s15, 0
      %p192 = por %p190, %p191
      %p193 = scmp.ne.s32.totalorder %s182, %s185
      %p194 = scmp.eq.s32.totalorder %s20, 1
      %p195 = por %p193, %p194
      %p196 = scmp.ne.s32.totalorder %s185, %s186
      %p197 = scmp.eq.s32.totalorder %s20, 0
      %p198 = por %p196, %p197
      %p199 = scmp.ne.s32.totalorder %s185, %s186
      %p200 = scmp.eq.s32.totalorder %s21, 1
      %p201 = por %p199, %p200
      %p203 = scmp.ne.s32.totalorder %s186, %s202
      %p204 = scmp.eq.s32.totalorder %s21, 0
      %p205 = por %p203, %p204
      %p206 = scmp.le.s32.totalorder 1, %s15
      %p207 = scmp.lt.s32.totalorder %s15, 3
      %p208 = pnand %p206, %p207
      %p209 = pneg %p208
      // Predicated region
      $region9: #{tpu_custom_call.1} parent=5 // pred_check
        _
      $region10: #{tpu_custom_call.1} parent=5 // pred_check_branch
        %211 = sbr.rel (%p208) target = $region12
      $region11: #{tpu_custom_call.1} parent=5 // pred_region
        %s212 = ssub.s32 %s15, 1
        // Predicated region
        $region13: #{tpu_custom_call.1} parent=11 // pred_check
          %p213 = pneg %p128
        $region14: #{tpu_custom_call.1} parent=11 // pred_check_branch
          %215 = sbr.rel (%p213) target = $region16
        $region15: #{tpu_custom_call.1} parent=11 // pred_region
          _
        $region16: #{tpu_custom_call.1} parent=11 // pred_fallthru
          _
        // Predicated region
        $region17: #{tpu_custom_call.1} parent=11 // pred_check
          %p216 = pneg %p149
        $region18: #{tpu_custom_call.1} parent=11 // pred_check_branch
          %218 = sbr.rel (%p216) target = $region20
        $region19: #{tpu_custom_call.1} parent=11 // pred_region
          _
        $region20: #{tpu_custom_call.1} parent=11 // pred_fallthru
          _
        // Predicated region
        $region21: #{tpu_custom_call.1} parent=11 // pred_check
          %p219 = pneg %p170
        $region22: #{tpu_custom_call.1} parent=11 // pred_check_branch
          %221 = sbr.rel (%p219) target = $region24
        $region23: #{tpu_custom_call.1} parent=11 // pred_region
          _
        $region24: #{tpu_custom_call.1} parent=11 // pred_fallthru
          _
      $region12: #{tpu_custom_call.1} parent=5 // pred_fallthru
        _
      %p222 = scmp.lt.s32.totalorder %s15, 2
      // Predicated region
      $region25: #{tpu_custom_call.1} parent=5 // pred_check
        %p223 = pneg %p222
      $region26: #{tpu_custom_call.1} parent=5 // pred_check_branch
        %225 = sbr.rel (%p223) target = $region28
      $region27: #{tpu_custom_call.1} parent=5 // pred_region
        // Predicated region
        $region29: #{tpu_custom_call.1} parent=27 // pred_check
          %p226 = pneg %p49
        $region30: #{tpu_custom_call.1} parent=27 // pred_check_branch
          %228 = sbr.rel (%p226) target = $region32
        $region31: #{tpu_custom_call.1} parent=27 // pred_region
          %p229 = scmp.lt.s32.totalorder %s22, 1
          %s230 = scalar_select %p229, %s22, 1
          %p231 = scmp.lt.s32.totalorder %s23, 0
          %s232 = scalar_select %p231, %s23, 0
          %s233 = sadd.s32 %s232, %s230
          %s234 = smul.addr %s233, 8
          %s235 = scalar_lea.vmem %s0, %s234
        $region32: #{tpu_custom_call.1} parent=27 // pred_fallthru
          _
        // Predicated region
        $region33: #{tpu_custom_call.1} parent=27 // pred_check
          %p236 = pneg %p75
        $region34: #{tpu_custom_call.1} parent=27 // pred_check_branch
          %238 = sbr.rel (%p236) target = $region36
        $region35: #{tpu_custom_call.1} parent=27 // pred_region
          %p239 = scmp.lt.s32.totalorder %s22, 1
          %s240 = scalar_select %p239, %s22, 1
          %s241 = smul.addr %s240, 2
          %s242 = smul.addr %s241, 8
          %s243 = scalar_lea.vmem %s1, %s242
        $region36: #{tpu_custom_call.1} parent=27 // pred_fallthru
          _
        // Predicated region
        $region37: #{tpu_custom_call.1} parent=27 // pred_check
          %p244 = pneg %p101
        $region38: #{tpu_custom_call.1} parent=27 // pred_check_branch
          %246 = sbr.rel (%p244) target = $region40
        $region39: #{tpu_custom_call.1} parent=27 // pred_region
          %p247 = scmp.lt.s32.totalorder %s22, 1
          %s248 = scalar_select %p247, %s22, 1
          %s249 = smul.addr %s248, 4
          %s250 = smul.addr %s249, 8
          %s251 = scalar_lea.vmem %s2, %s250
        $region40: #{tpu_custom_call.1} parent=27 // pred_fallthru
          _
      $region28: #{tpu_custom_call.1} parent=5 // pred_fallthru
        _
      %p252 = scmp.le.s32.totalorder 1, %s15
      %p253 = scmp.lt.s32.totalorder %s15, 3
      %p254 = pnand %p252, %p253
      %p255 = pneg %p254
      // Predicated region
      $region41: #{tpu_custom_call.1} parent=5 // pred_check
        _
      $region42: #{tpu_custom_call.1} parent=5 // pred_check_branch
        %257 = sbr.rel (%p254) target = $region44
      $region43: #{tpu_custom_call.1} parent=5 // pred_region
        %s258 = ssub.s32 %s15, 1
        %p259 = scmp.lt.s32.totalorder %s24, 1
        %s260 = scalar_select %p259, %s24, 1
        %p261 = scmp.lt.s32.totalorder %s25, 0
        %s262 = scalar_select %p261, %s25, 0
        %s263 = sadd.s32 %s262, %s260
        %s264 = smul.addr %s263, 8
        %s265 = scalar_lea.vmem %s0, %s264
        %p266 = pneg %p55
        %p267 = pneg %p52
        %p268 = scmp.lt.s32.totalorder %s24, 1
        %s269 = scalar_select %p268, %s24, 1
        %s270 = smul.addr %s269, 2
        %s271 = smul.addr %s270, 8
        %s272 = scalar_lea.vmem %s1, %s271
        %p273 = pneg %p81
        %p274 = pneg %p78
        %p275 = scmp.lt.s32.totalorder %s24, 1
        %s276 = scalar_select %p275, %s24, 1
        %s277 = smul.addr %s276, 4
        %s278 = smul.addr %s277, 8
        %s279 = scalar_lea.vmem %s2, %s278
        %p280 = pneg %p107
        %p281 = pneg %p104
        %p282 = pneg %p128
        %p283 = pneg %p125
        %p284 = pneg %p149
        %p285 = pneg %p146
        %p286 = pneg %p170
        %p287 = pneg %p167
        %p288 = pneg %p198
        %p289 = pneg %p195
        %s290 = sand.u32 %s185, 1
        %s291 = scalar_lea.sflag [#allocation4], %s290
        %s292 = sand.u32 %s185, 1
        %s293 = smul.addr %s292, 8
        %s294 = scalar_lea.vmem [#allocation3], %s293
        %p295 = scmp.lt.s32.totalorder %s24, 1
        %s296 = scalar_select %p295, %s24, 1
        %p297 = scmp.lt.s32.totalorder %s25, 0
        %s298 = scalar_select %p297, %s25, 0
        %s299 = sadd.s32 %s298, %s296
        %s300 = smul.addr %s299, 8
        %s301 = scalar_lea.vmem %s0, %s300
        %p302 = scmp.lt.s32.totalorder %s24, 1
        %s303 = scalar_select %p302, %s24, 1
        %s304 = smul.addr %s303, 2
        %s305 = smul.addr %s304, 8
        %s306 = scalar_lea.vmem %s1, %s305
        %p307 = scmp.lt.s32.totalorder %s24, 1
        %s308 = scalar_select %p307, %s24, 1
        %s309 = smul.addr %s308, 4
        %s310 = smul.addr %s309, 8
        %s311 = scalar_lea.vmem %s2, %s310
        %v312 = vld [vmem:[%s301] sm:$0xff]
        %v313 = vld [vmem:[%s306] sm:$0xff]
        %v314 = vld [vmem:[%s306 + $0x8] sm:$0xff]
        %v315 = vld [vmem:[%s311] sm:$0xff]
        %v316 = vld [vmem:[%s311 + $0x8] sm:$0xff]
        %v317 = vld [vmem:[%s311 + $0x10] sm:$0xff]
        %v318 = vld [vmem:[%s311 + $0x18] sm:$0xff]
        %v319 = vld [vmem:[%s3] sm:$0xff]
        %v320 = vld [vmem:[%s3 + $0x8] sm:$0xff]
        %v321 = vld [vmem:[%s3 + $0x10] sm:$0xff]
        %v322 = vld [vmem:[%s3 + $0x18] sm:$0xff]
        %vm323 = vcmask 64512
        %v325 = vsel %vm323, %v319, 0
        %v328 = vsel %vm323, %v320, 0
        %v331 = vsel %vm323, %v321, 0
        %v334 = vsel %vm323, %v322, 0
        %336 = vmatprep.subr.mxu0 0.0
        %337 = vmatpush1.msra.mxu0 0.0
        %338 = vmatprep.subr.mxu0 0.0
        %339 = vmatpush1.msra.mxu0 0.0
        %340 = vmatprep.subr.mxu0 0.0
        %341 = vmatpush1.msra.mxu0 0.0
        %342 = vmatprep.subr.mxu0 0.0
        %343 = vmatpush1.msra.mxu0 0.0
        %344 = vmatprep.subr.mxu0 0.0
        %345 = vmatpush1.msra.mxu0 0.0
        %346 = vmatprep.subr.mxu0 0.0
        %347 = vmatpush1.msra.mxu0 0.0
        %348 = vmatprep.subr.mxu0 0.0
        %349 = vmatpush1.msra.mxu0 0.0
        %350 = vmatprep.subr.mxu0 0.0
        %351 = vmatpush1.msra.mxu0 0.0
        %352 = vmatprep.subr.mxu0 0.0
        %353 = vmatpush1.msra.mxu0 0.0
        %354 = vmatprep.subr.mxu0 0.0
        %355 = vmatpush1.msra.mxu0 0.0
        %356 = vmatprep.subr.mxu0 0.0
        %357 = vmatpush1.msra.mxu0 0.0
        %358 = vmatprep.subr.mxu0 0.0
        %359 = vmatpush1.msra.mxu0 0.0
        %360 = vmatprep.subr.mxu0 0.0
        %361 = vmatpush1.msra.mxu0 0.0
        %362 = vmatprep.subr.mxu0 0.0
        %363 = vmatpush1.msra.mxu0 0.0
        %364 = vmatprep.subr.mxu0 0.0
        %365 = vmatpush1.msra.mxu0 0.0
        %366 = vmatprep.subr.mxu0 0.0
        %367 = vmatpush1.msra.mxu0 %v312
        %368 = vmatprep.subr.mxu0 0.0
        %369 = vmatpush2.msra.mxu0 0.0
        %370 = vmatprep.subr.mxu0 0.0
        %371 = vmatpush2.msra.mxu0 0.0
        %372 = vmatprep.subr.mxu0 0.0
        %373 = vmatpush2.msra.mxu0 0.0
        %374 = vmatprep.subr.mxu0 0.0
        %375 = vmatpush2.msra.mxu0 0.0
        %376 = vmatprep.subr.mxu0 0.0
        %377 = vmatpush2.msra.mxu0 0.0
        %378 = vmatprep.subr.mxu0 0.0
        %379 = vmatpush2.msra.mxu0 0.0
        %380 = vmatprep.subr.mxu0 0.0
        %381 = vmatpush2.msra.mxu0 0.0
        %382 = vmatprep.subr.mxu0 0.0
        %383 = vmatpush2.msra.mxu0 0.0
        %384 = vmatprep.subr.mxu0 0.0
        %385 = vmatpush2.msra.mxu0 0.0
        %386 = vmatprep.subr.mxu0 0.0
        %387 = vmatpush2.msra.mxu0 0.0
        %388 = vmatprep.subr.mxu0 0.0
        %389 = vmatpush2.msra.mxu0 0.0
        %390 = vmatprep.subr.mxu0 0.0
        %391 = vmatpush2.msra.mxu0 0.0
        %392 = vmatprep.subr.mxu0 0.0
        %393 = vmatpush2.msra.mxu0 0.0
        %394 = vmatprep.subr.mxu0 0.0
        %395 = vmatpush2.msra.mxu0 0.0
        %396 = vmatprep.subr.mxu0 0.0
        %397 = vmatpush2.msra.mxu0 0.0
        %398 = vmatprep.subr.mxu0 0.0
        %399 = vmatpush2.msra.mxu0 0.0
        %400 = vmatprep.mubr.f32.mxu0 0.0
        %401 = vmatmul.mubr.f32.gmra.mxu0 %v325
        %v402 = vpop.f32.mrf.mxu0
        %v403 = vadd.f32 0.0, %v402
        %v404 = vpop.f32.mrf.mxu0
        %405 = vmatprep.mubr.f32.mxu0 0.0
        %406 = vmatmul.mubr.f32.gmra.mxu0 %v328
        %v407 = vpop.f32.mrf.mxu0
        %v408 = vadd.f32 0.0, %v407
        %v409 = vpop.f32.mrf.mxu0
        %410 = vmatprep.mubr.f32.mxu0 0.0
        %411 = vmatmul.mubr.f32.gmra.mxu0 %v331
        %v412 = vpop.f32.mrf.mxu0
        %v413 = vadd.f32 0.0, %v412
        %v414 = vpop.f32.mrf.mxu0
        %415 = vmatprep.mubr.f32.mxu0 0.0
        %416 = vmatmul.mubr.f32.gmra.mxu0 %v334
        %v417 = vpop.f32.mrf.mxu0
        %v418 = vadd.f32 0.0, %v417
        %v419 = vpop.f32.mrf.mxu0
        %420 = vdwg.mxu0
        %vm421 = vcmask 130048
        %v423 = vsel %vm421, %v313, 0
        %425 = vmatprep.subr.mxu0 0.0
        %426 = vmatpush1.msra.mxu0 0.0
        %427 = vmatprep.subr.mxu0 0.0
        %428 = vmatpush1.msra.mxu0 0.0
        %429 = vmatprep.subr.mxu0 0.0
        %430 = vmatpush1.msra.mxu0 0.0
        %431 = vmatprep.subr.mxu0 0.0
        %432 = vmatpush1.msra.mxu0 0.0
        %433 = vmatprep.subr.mxu0 0.0
        %434 = vmatpush1.msra.mxu0 0.0
        %435 = vmatprep.subr.mxu0 0.0
        %436 = vmatpush1.msra.mxu0 0.0
        %437 = vmatprep.subr.mxu0 0.0
        %438 = vmatpush1.msra.mxu0 0.0
        %439 = vmatprep.subr.mxu0 0.0
        %440 = vmatpush1.msra.mxu0 0.0
        %441 = vmatprep.subr.mxu0 0.0
        %442 = vmatpush1.msra.mxu0 0.0
        %443 = vmatprep.subr.mxu0 0.0
        %444 = vmatpush1.msra.mxu0 0.0
        %445 = vmatprep.subr.mxu0 0.0
        %446 = vmatpush1.msra.mxu0 0.0
        %447 = vmatprep.subr.mxu0 0.0
        %448 = vmatpush1.msra.mxu0 0.0
        %449 = vmatprep.subr.mxu0 0.0
        %450 = vmatpush1.msra.mxu0 0.0
        %451 = vmatprep.subr.mxu0 0.0
        %452 = vmatpush1.msra.mxu0 0.0
        %453 = vmatprep.subr.mxu0 0.0
        %454 = vmatpush1.msra.mxu0 %v408
        %455 = vmatprep.subr.mxu0 0.0
        %456 = vmatpush1.msra.mxu0 %v403
        %457 = vmatprep.subr.mxu0 0.0
        %458 = vmatpush2.msra.mxu0 0.0
        %459 = vmatprep.subr.mxu0 0.0
        %460 = vmatpush2.msra.mxu0 0.0
        %461 = vmatprep.subr.mxu0 0.0
        %462 = vmatpush2.msra.mxu0 0.0
        %463 = vmatprep.subr.mxu0 0.0
        %464 = vmatpush2.msra.mxu0 0.0
        %465 = vmatprep.subr.mxu0 0.0
        %466 = vmatpush2.msra.mxu0 0.0
        %467 = vmatprep.subr.mxu0 0.0
        %468 = vmatpush2.msra.mxu0 0.0
        %469 = vmatprep.subr.mxu0 0.0
        %470 = vmatpush2.msra.mxu0 0.0
        %471 = vmatprep.subr.mxu0 0.0
        %472 = vmatpush2.msra.mxu0 0.0
        %473 = vmatprep.subr.mxu0 0.0
        %474 = vmatpush2.msra.mxu0 0.0
        %475 = vmatprep.subr.mxu0 0.0
        %476 = vmatpush2.msra.mxu0 0.0
        %477 = vmatprep.subr.mxu0 0.0
        %478 = vmatpush2.msra.mxu0 0.0
        %479 = vmatprep.subr.mxu0 0.0
        %480 = vmatpush2.msra.mxu0 0.0
        %481 = vmatprep.subr.mxu0 0.0
        %482 = vmatpush2.msra.mxu0 0.0
        %483 = vmatprep.subr.mxu0 0.0
        %484 = vmatpush2.msra.mxu0 0.0
        %485 = vmatprep.subr.mxu0 0.0
        %486 = vmatpush2.msra.mxu0 0.0
        %487 = vmatprep.subr.mxu0 0.0
        %488 = vmatpush2.msra.mxu0 0.0
        %489 = vmatprep.mubr.f32.mxu0 0.0
        %490 = vmatmul.mubr.f32.gmra.mxu0 %v423
        %v491 = vpop.f32.mrf.mxu0
        %v492 = vadd.f32 0.0, %v491
        %v493 = vpop.f32.mrf.mxu0
        %494 = vdwg.mxu0
        %v495 = vsel %vm421, %v492, -inf
        %v496 = vrot.slane %v495, 4
        %v497 = vmax.f32 %v495, %v496
        %v498 = vrot.slane %v497, 2
        %v499 = vmax.f32 %v497, %v498
        %v500 = vrot.slane %v499, 1
        %v501 = vmax.f32 %v499, %v500
        %v502 = vsub.f32 %v492, %v501
        %v503 = vmul.f32 %v502, 1.442695
        %v504 = vpow.pop %v503
        %v505 = vsel %vm421, %v504, 0.0
        %v506 = vrot.slane %v505, 4
        %v507 = vadd.f32 %v505, %v506
        %v508 = vrot.slane %v507, 2
        %v509 = vadd.f32 %v507, %v508
        %v510 = vrot.slane %v509, 1
        %v511 = vadd.f32 %v509, %v510
        %v512 = vrcp.pop %v511
        %v513 = vmul.f32 %v504, %v512
        %v515 = vsel %vm323, %v315, 0
        %v518 = vsel %vm323, %v316, 0
        %520 = vmatprep.subr.mxu0 0.0
        %521 = vmatpush1.msra.mxu0 0.0
        %522 = vmatprep.subr.mxu0 0.0
        %523 = vmatpush1.msra.mxu0 0.0
        %524 = vmatprep.subr.mxu0 0.0
        %525 = vmatpush1.msra.mxu0 0.0
        %526 = vmatprep.subr.mxu0 0.0
        %527 = vmatpush1.msra.mxu0 0.0
        %528 = vmatprep.subr.mxu0 0.0
        %529 = vmatpush1.msra.mxu0 0.0
        %530 = vmatprep.subr.mxu0 0.0
        %531 = vmatpush1.msra.mxu0 0.0
        %532 = vmatprep.subr.mxu0 0.0
        %533 = vmatpush1.msra.mxu0 0.0
        %534 = vmatprep.subr.mxu0 0.0
        %535 = vmatpush1.msra.mxu0 0.0
        %536 = vmatprep.subr.mxu0 0.0
        %537 = vmatpush1.msra.mxu0 0.0
        %538 = vmatprep.subr.mxu0 0.0
        %539 = vmatpush1.msra.mxu0 0.0
        %540 = vmatprep.subr.mxu0 0.0
        %541 = vmatpush1.msra.mxu0 0.0
        %542 = vmatprep.subr.mxu0 0.0
        %543 = vmatpush1.msra.mxu0 0.0
        %544 = vmatprep.subr.mxu0 0.0
        %545 = vmatpush1.msra.mxu0 0.0
        %546 = vmatprep.subr.mxu0 0.0
        %547 = vmatpush1.msra.mxu0 0.0
        %548 = vmatprep.subr.mxu0 0.0
        %549 = vmatpush1.msra.mxu0 0.0
        %550 = vmatprep.subr.mxu0 0.0
        %551 = vmatpush1.msra.mxu0 %v513
        %552 = vmatprep.subr.mxu0 0.0
        %553 = vmatpush2.msra.mxu0 0.0
        %554 = vmatprep.subr.mxu0 0.0
        %555 = vmatpush2.msra.mxu0 0.0
        %556 = vmatprep.subr.mxu0 0.0
        %557 = vmatpush2.msra.mxu0 0.0
        %558 = vmatprep.subr.mxu0 0.0
        %559 = vmatpush2.msra.mxu0 0.0
        %560 = vmatprep.subr.mxu0 0.0
        %561 = vmatpush2.msra.mxu0 0.0
        %562 = vmatprep.subr.mxu0 0.0
        %563 = vmatpush2.msra.mxu0 0.0
        %564 = vmatprep.subr.mxu0 0.0
        %565 = vmatpush2.msra.mxu0 0.0
        %566 = vmatprep.subr.mxu0 0.0
        %567 = vmatpush2.msra.mxu0 0.0
        %568 = vmatprep.subr.mxu0 0.0
        %569 = vmatpush2.msra.mxu0 0.0
        %570 = vmatprep.subr.mxu0 0.0
        %571 = vmatpush2.msra.mxu0 0.0
        %572 = vmatprep.subr.mxu0 0.0
        %573 = vmatpush2.msra.mxu0 0.0
        %574 = vmatprep.subr.mxu0 0.0
        %575 = vmatpush2.msra.mxu0 0.0
        %576 = vmatprep.subr.mxu0 0.0
        %577 = vmatpush2.msra.mxu0 0.0
        %578 = vmatprep.subr.mxu0 0.0
        %579 = vmatpush2.msra.mxu0 0.0
        %580 = vmatprep.subr.mxu0 0.0
        %581 = vmatpush2.msra.mxu0 0.0
        %582 = vmatprep.subr.mxu0 0.0
        %583 = vmatpush2.msra.mxu0 0.0
        %584 = vmatprep.mubr.f32.mxu0 0.0
        %585 = vmatmul.mubr.f32.gmra.mxu0 %v515
        %v586 = vpop.f32.mrf.mxu0
        %v587 = vadd.f32 0.0, %v586
        %v588 = vpop.f32.mrf.mxu0
        %589 = vmatprep.mubr.f32.mxu0 0.0
        %590 = vmatmul.mubr.f32.gmra.mxu0 %v518
        %v591 = vpop.f32.mrf.mxu0
        %v592 = vadd.f32 0.0, %v591
        %v593 = vpop.f32.mrf.mxu0
        %594 = vdwg.mxu0
        %595 = vst.msk [vmem:[#allocation2] sm:$0xff] %vm421, %v587
        %596 = vst.msk [vmem:[#allocation2 + $0x8] sm:$0xff] %vm421, %v592
        %v598 = vsel %vm421, %v314, 0
        %600 = vmatprep.subr.mxu0 0.0
        %601 = vmatpush1.msra.mxu0 0.0
        %602 = vmatprep.subr.mxu0 0.0
        %603 = vmatpush1.msra.mxu0 0.0
        %604 = vmatprep.subr.mxu0 0.0
        %605 = vmatpush1.msra.mxu0 0.0
        %606 = vmatprep.subr.mxu0 0.0
        %607 = vmatpush1.msra.mxu0 0.0
        %608 = vmatprep.subr.mxu0 0.0
        %609 = vmatpush1.msra.mxu0 0.0
        %610 = vmatprep.subr.mxu0 0.0
        %611 = vmatpush1.msra.mxu0 0.0
        %612 = vmatprep.subr.mxu0 0.0
        %613 = vmatpush1.msra.mxu0 0.0
        %614 = vmatprep.subr.mxu0 0.0
        %615 = vmatpush1.msra.mxu0 0.0
        %616 = vmatprep.subr.mxu0 0.0
        %617 = vmatpush1.msra.mxu0 0.0
        %618 = vmatprep.subr.mxu0 0.0
        %619 = vmatpush1.msra.mxu0 0.0
        %620 = vmatprep.subr.mxu0 0.0
        %621 = vmatpush1.msra.mxu0 0.0
        %622 = vmatprep.subr.mxu0 0.0
        %623 = vmatpush1.msra.mxu0 0.0
        %624 = vmatprep.subr.mxu0 0.0
        %625 = vmatpush1.msra.mxu0 0.0
        %626 = vmatprep.subr.mxu0 0.0
        %627 = vmatpush1.msra.mxu0 0.0
        %628 = vmatprep.subr.mxu0 0.0
        %629 = vmatpush1.msra.mxu0 %v418
        %630 = vmatprep.subr.mxu0 0.0
        %631 = vmatpush1.msra.mxu0 %v413
        %632 = vmatprep.subr.mxu0 0.0
        %633 = vmatpush2.msra.mxu0 0.0
        %634 = vmatprep.subr.mxu0 0.0
        %635 = vmatpush2.msra.mxu0 0.0
        %636 = vmatprep.subr.mxu0 0.0
        %637 = vmatpush2.msra.mxu0 0.0
        %638 = vmatprep.subr.mxu0 0.0
        %639 = vmatpush2.msra.mxu0 0.0
        %640 = vmatprep.subr.mxu0 0.0
        %641 = vmatpush2.msra.mxu0 0.0
        %642 = vmatprep.subr.mxu0 0.0
        %643 = vmatpush2.msra.mxu0 0.0
        %644 = vmatprep.subr.mxu0 0.0
        %645 = vmatpush2.msra.mxu0 0.0
        %646 = vmatprep.subr.mxu0 0.0
        %647 = vmatpush2.msra.mxu0 0.0
        %648 = vmatprep.subr.mxu0 0.0
        %649 = vmatpush2.msra.mxu0 0.0
        %650 = vmatprep.subr.mxu0 0.0
        %651 = vmatpush2.msra.mxu0 0.0
        %652 = vmatprep.subr.mxu0 0.0
        %653 = vmatpush2.msra.mxu0 0.0
        %654 = vmatprep.subr.mxu0 0.0
        %655 = vmatpush2.msra.mxu0 0.0
        %656 = vmatprep.subr.mxu0 0.0
        %657 = vmatpush2.msra.mxu0 0.0
        %658 = vmatprep.subr.mxu0 0.0
        %659 = vmatpush2.msra.mxu0 0.0
        %660 = vmatprep.subr.mxu0 0.0
        %661 = vmatpush2.msra.mxu0 0.0
        %662 = vmatprep.subr.mxu0 0.0
        %663 = vmatpush2.msra.mxu0 0.0
        %664 = vmatprep.mubr.f32.mxu0 0.0
        %665 = vmatmul.mubr.f32.gmra.mxu0 %v598
        %v666 = vpop.f32.mrf.mxu0
        %v667 = vadd.f32 0.0, %v666
        %v668 = vpop.f32.mrf.mxu0
        %669 = vdwg.mxu0
        %v670 = vsel %vm421, %v667, -inf
        %v671 = vrot.slane %v670, 4
        %v672 = vmax.f32 %v670, %v671
        %v673 = vrot.slane %v672, 2
        %v674 = vmax.f32 %v672, %v673
        %v675 = vrot.slane %v674, 1
        %v676 = vmax.f32 %v674, %v675
        %v677 = vsub.f32 %v667, %v676
        %v678 = vmul.f32 %v677, 1.442695
        %v679 = vpow.pop %v678
        %v680 = vsel %vm421, %v679, 0.0
        %v681 = vrot.slane %v680, 4
        %v682 = vadd.f32 %v680, %v681
        %v683 = vrot.slane %v682, 2
        %v684 = vadd.f32 %v682, %v683
        %v685 = vrot.slane %v684, 1
        %v686 = vadd.f32 %v684, %v685
        %v687 = vrcp.pop %v686
        %v688 = vmul.f32 %v679, %v687
        %v690 = vsel %vm323, %v317, 0
        %v693 = vsel %vm323, %v318, 0
        %695 = vmatprep.subr.mxu0 0.0
        %696 = vmatpush1.msra.mxu0 0.0
        %697 = vmatprep.subr.mxu0 0.0
        %698 = vmatpush1.msra.mxu0 0.0
        %699 = vmatprep.subr.mxu0 0.0
        %700 = vmatpush1.msra.mxu0 0.0
        %701 = vmatprep.subr.mxu0 0.0
        %702 = vmatpush1.msra.mxu0 0.0
        %703 = vmatprep.subr.mxu0 0.0
        %704 = vmatpush1.msra.mxu0 0.0
        %705 = vmatprep.subr.mxu0 0.0
        %706 = vmatpush1.msra.mxu0 0.0
        %707 = vmatprep.subr.mxu0 0.0
        %708 = vmatpush1.msra.mxu0 0.0
        %709 = vmatprep.subr.mxu0 0.0
        %710 = vmatpush1.msra.mxu0 0.0
        %711 = vmatprep.subr.mxu0 0.0
        %712 = vmatpush1.msra.mxu0 0.0
        %713 = vmatprep.subr.mxu0 0.0
        %714 = vmatpush1.msra.mxu0 0.0
        %715 = vmatprep.subr.mxu0 0.0
        %716 = vmatpush1.msra.mxu0 0.0
        %717 = vmatprep.subr.mxu0 0.0
        %718 = vmatpush1.msra.mxu0 0.0
        %719 = vmatprep.subr.mxu0 0.0
        %720 = vmatpush1.msra.mxu0 0.0
        %721 = vmatprep.subr.mxu0 0.0
        %722 = vmatpush1.msra.mxu0 0.0
        %723 = vmatprep.subr.mxu0 0.0
        %724 = vmatpush1.msra.mxu0 0.0
        %725 = vmatprep.subr.mxu0 0.0
        %726 = vmatpush1.msra.mxu0 %v688
        %727 = vmatprep.subr.mxu0 0.0
        %728 = vmatpush2.msra.mxu0 0.0
        %729 = vmatprep.subr.mxu0 0.0
        %730 = vmatpush2.msra.mxu0 0.0
        %731 = vmatprep.subr.mxu0 0.0
        %732 = vmatpush2.msra.mxu0 0.0
        %733 = vmatprep.subr.mxu0 0.0
        %734 = vmatpush2.msra.mxu0 0.0
        %735 = vmatprep.subr.mxu0 0.0
        %736 = vmatpush2.msra.mxu0 0.0
        %737 = vmatprep.subr.mxu0 0.0
        %738 = vmatpush2.msra.mxu0 0.0
        %739 = vmatprep.subr.mxu0 0.0
        %740 = vmatpush2.msra.mxu0 0.0
        %741 = vmatprep.subr.mxu0 0.0
        %742 = vmatpush2.msra.mxu0 0.0
        %743 = vmatprep.subr.mxu0 0.0
        %744 = vmatpush2.msra.mxu0 0.0
        %745 = vmatprep.subr.mxu0 0.0
        %746 = vmatpush2.msra.mxu0 0.0
        %747 = vmatprep.subr.mxu0 0.0
        %748 = vmatpush2.msra.mxu0 0.0
        %749 = vmatprep.subr.mxu0 0.0
        %750 = vmatpush2.msra.mxu0 0.0
        %751 = vmatprep.subr.mxu0 0.0
        %752 = vmatpush2.msra.mxu0 0.0
        %753 = vmatprep.subr.mxu0 0.0
        %754 = vmatpush2.msra.mxu0 0.0
        %755 = vmatprep.subr.mxu0 0.0
        %756 = vmatpush2.msra.mxu0 0.0
        %757 = vmatprep.subr.mxu0 0.0
        %758 = vmatpush2.msra.mxu0 0.0
        %759 = vmatprep.mubr.f32.mxu0 0.0
        %760 = vmatmul.mubr.f32.gmra.mxu0 %v690
        %v761 = vpop.f32.mrf.mxu0
        %v762 = vadd.f32 0.0, %v761
        %v763 = vpop.f32.mrf.mxu0
        %764 = vmatprep.mubr.f32.mxu0 0.0
        %765 = vmatmul.mubr.f32.gmra.mxu0 %v693
        %v766 = vpop.f32.mrf.mxu0
        %v767 = vadd.f32 0.0, %v766
        %v768 = vpop.f32.mrf.mxu0
        %769 = vdwg.mxu0
        %770 = vst.msk [vmem:[#allocation2 + $0x10] sm:$0xff] %vm421, %v762
        %771 = vst.msk [vmem:[#allocation2 + $0x18] sm:$0xff] %vm421, %v767
        %v772 = vld [vmem:[%s4] sm:$0xff]
        %v773 = vld [vmem:[#allocation2] sm:$0xff]
        %v774 = vld [vmem:[#allocation2 + $0x8] sm:$0xff]
        %v775 = vld [vmem:[#allocation2 + $0x10] sm:$0xff]
        %v776 = vld [vmem:[#allocation2 + $0x18] sm:$0xff]
        %v777 = vld [vmem:[%s5] sm:$0xff]
        %779 = vset.pattern.permute.xlu0 0
        %780 = vperm.xlu0 %779, %v777
        %v781 = vpop.permute.xlu0 %780
        %vm783 = vcmask 261120
        %v785 = vsel %vm783, %v772, 0
        %787 = vmatprep.subr.mxu0 0.0
        %788 = vmatpush1.msra.mxu0 0.0
        %789 = vmatprep.subr.mxu0 0.0
        %790 = vmatpush1.msra.mxu0 0.0
        %791 = vmatprep.subr.mxu0 0.0
        %792 = vmatpush1.msra.mxu0 0.0
        %793 = vmatprep.subr.mxu0 0.0
        %794 = vmatpush1.msra.mxu0 0.0
        %795 = vmatprep.subr.mxu0 0.0
        %796 = vmatpush1.msra.mxu0 0.0
        %797 = vmatprep.subr.mxu0 0.0
        %798 = vmatpush1.msra.mxu0 0.0
        %799 = vmatprep.subr.mxu0 0.0
        %800 = vmatpush1.msra.mxu0 0.0
        %801 = vmatprep.subr.mxu0 0.0
        %802 = vmatpush1.msra.mxu0 0.0
        %803 = vmatprep.subr.mxu0 0.0
        %804 = vmatpush1.msra.mxu0 0.0
        %805 = vmatprep.subr.mxu0 0.0
        %806 = vmatpush1.msra.mxu0 0.0
        %807 = vmatprep.subr.mxu0 0.0
        %808 = vmatpush1.msra.mxu0 0.0
        %809 = vmatprep.subr.mxu0 0.0
        %810 = vmatpush1.msra.mxu0 0.0
        %811 = vmatprep.subr.mxu0 0.0
        %812 = vmatpush1.msra.mxu0 %v776
        %813 = vmatprep.subr.mxu0 0.0
        %814 = vmatpush1.msra.mxu0 %v775
        %815 = vmatprep.subr.mxu0 0.0
        %816 = vmatpush1.msra.mxu0 %v774
        %817 = vmatprep.subr.mxu0 0.0
        %818 = vmatpush1.msra.mxu0 %v773
        %819 = vmatprep.subr.mxu0 0.0
        %820 = vmatpush2.msra.mxu0 0.0
        %821 = vmatprep.subr.mxu0 0.0
        %822 = vmatpush2.msra.mxu0 0.0
        %823 = vmatprep.subr.mxu0 0.0
        %824 = vmatpush2.msra.mxu0 0.0
        %825 = vmatprep.subr.mxu0 0.0
        %826 = vmatpush2.msra.mxu0 0.0
        %827 = vmatprep.subr.mxu0 0.0
        %828 = vmatpush2.msra.mxu0 0.0
        %829 = vmatprep.subr.mxu0 0.0
        %830 = vmatpush2.msra.mxu0 0.0
        %831 = vmatprep.subr.mxu0 0.0
        %832 = vmatpush2.msra.mxu0 0.0
        %833 = vmatprep.subr.mxu0 0.0
        %834 = vmatpush2.msra.mxu0 0.0
        %835 = vmatprep.subr.mxu0 0.0
        %836 = vmatpush2.msra.mxu0 0.0
        %837 = vmatprep.subr.mxu0 0.0
        %838 = vmatpush2.msra.mxu0 0.0
        %839 = vmatprep.subr.mxu0 0.0
        %840 = vmatpush2.msra.mxu0 0.0
        %841 = vmatprep.subr.mxu0 0.0
        %842 = vmatpush2.msra.mxu0 0.0
        %843 = vmatprep.subr.mxu0 0.0
        %844 = vmatpush2.msra.mxu0 0.0
        %845 = vmatprep.subr.mxu0 0.0
        %846 = vmatpush2.msra.mxu0 0.0
        %847 = vmatprep.subr.mxu0 0.0
        %848 = vmatpush2.msra.mxu0 0.0
        %849 = vmatprep.subr.mxu0 0.0
        %850 = vmatpush2.msra.mxu0 0.0
        %851 = vmatprep.mubr.f32.mxu0 0.0
        %852 = vmatmul.mubr.f32.gmra.mxu0 %v785
        %v853 = vpop.f32.mrf.mxu0
        %v854 = vadd.f32 %v781, %v853
        %v855 = vpop.f32.mrf.mxu0
        %856 = vdwg.mxu0
        %857 = vst.msk [vmem:[%s294] sm:$0xff] %vm421, %v854
        %s858 = sand.u32 %s185, 1
        %s859 = scalar_lea.sflag [#allocation4], %s858
        %s860 = sand.u32 %s185, 1
        %s861 = smul.addr %s860, 8
        %s862 = scalar_lea.vmem [#allocation3], %s861
        // Predicated region
        $region45: #{tpu_custom_call.1} parent=43 // pred_check
          %p863 = pneg %p195
        $region46: #{tpu_custom_call.1} parent=43 // pred_check_branch
          %865 = sbr.rel (%p863) target = $region48
        $region47: #{tpu_custom_call.1} parent=43 // pred_region
          %s867 = ssub.s32 128, 128
          %868 = vsyncadd %s859, %s867
          %s869 = sadd.s32 %s25, %s24
          %s870 = smul.addr %s869, 128
          %s871 = scalar_lea.hbm %s6, %s870
          %s873 = sshll.u32 %s862, 4
          %s874 = int_to_ptr.vmem [resolvable:$true] %s873
          %876 = dma.vmem_to_hbm [thread:$0]  %s874, 128, %s871, %s859
        $region48: #{tpu_custom_call.1} parent=43 // pred_fallthru
          _
      $region44: #{tpu_custom_call.1} parent=5 // pred_fallthru
        _
      %p877 = scmp.le.s32.totalorder 2, %s15
      // Predicated region
      $region49: #{tpu_custom_call.1} parent=5 // pred_check
        %p878 = pneg %p877
      $region50: #{tpu_custom_call.1} parent=5 // pred_check_branch
        %880 = sbr.rel (%p878) target = $region52
      $region51: #{tpu_custom_call.1} parent=5 // pred_region
        %s881 = ssub.s32 %s15, 2
        // Predicated region
        $region53: #{tpu_custom_call.1} parent=51 // pred_check
          %p882 = pneg %p201
        $region54: #{tpu_custom_call.1} parent=51 // pred_check_branch
          %884 = sbr.rel (%p882) target = $region56
        $region55: #{tpu_custom_call.1} parent=51 // pred_region
          %s885 = sand.u32 %s186, 1
          %s886 = scalar_lea.sflag [#allocation4], %s885
          %s887 = sand.u32 %s186, 1
          %s888 = smul.addr %s887, 8
          %s889 = scalar_lea.vmem [#allocation3], %s888
          %890 = dma.done %s886, 128
        $region56: #{tpu_custom_call.1} parent=51 // pred_fallthru
          _
      $region52: #{tpu_custom_call.1} parent=5 // pred_fallthru
        _
    $region6: #{tpu_custom_call.1} parent=1 // loop_footer
      %s19 = sadd.s32 1, %s15
    $region7: #{tpu_custom_call.1} parent=1 // loop_footer_branch
      %14 = sbr.rel target = $region3
    $region8: #{tpu_custom_call.1} parent=1 // loop_exit
      _
    %891 = vsyncpa [#allocation4], 1
    %s892 = scalar_lea.sflag [#allocation4], 1
    %893 = vsyncpa %s892, 1

</llo_original>
